<compile_context>
chip_gen: v6e
topology: v6e:2x2x1
jax: 0.10.0
libtpu: 0.0.40
codegen_flags: <defaults>
</compile_context>

<pallas_src>
import jax
import jax.numpy as jnp
from jax import lax
from jax.experimental import pallas as pl
from jax.experimental.pallas import tpu as pltpu

# ------------------------- problem sizes (small, deterministic) -----------------
B = 2         # batch
C_IN = 4      # n_in
C_OUT = 8     # n_out
L = 128       # sequence length (128 so stores / roll lanes are 128-multiples)
K = 3         # kernel_size
DIL = 1
# Conv1DBlock default padding for odd kernel: (k*dil - dil)//2 = 1
PAD = (K * DIL - DIL) // 2
BN_EPS = 1e-5
BL = B * L    # batch folded into the lane axis


# ------------------------------- fused Pallas kernel ----------------------------
def fused_conv_bn_relu_kernel(x_ref, w_ref, p_ref, o_ref, x2_ref):
    """Fused Conv1d(k=3, same pad) -> train-mode BatchNorm1d -> ReLU.

    x_ref  : (B, C_IN, L)      input, PyTorch NCL layout
    w_ref  : (K, C_OUT, C_IN)  conv weight, tap-major (no lane-minor K slicing)
    p_ref  : (2, C_OUT, 1)     [gamma; beta]   (conv bias dropped: cancels in BN)
    o_ref  : (B, C_OUT, L)     output, final NCL layout (no wrapper transpose)
    x2_ref : (C_IN, B*L)       VMEM scratch: batch folded into the lane axis
    """
    # --- fold batch into lanes: B aligned 128-lane copies -------------------------
    for b in range(B):
        x2_ref[:, b * L:(b + 1) * L] = x_ref[b]
    x2 = x2_ref[...]

    # lane position within its batch segment (for pad / batch-boundary masking)
    pos = lax.broadcasted_iota(jnp.int32, (C_IN, BL), 1) % L

    # --- conv: K shifted matmul-accumulates (shifts on the XLU via pltpu.roll) ----
    y = None
    for k in range(K):                       # K static & tiny -> fully unrolled
        shift = PAD - k                      # out[l] needs x[l + k - PAD]
        xk = x2
        if shift != 0:
            xk = pltpu.roll(x2, shift % BL, 1)
            valid = (pos >= shift) & (pos < L + shift)   # zero padding / batch edge
            xk = jnp.where(valid, xk, 0.0)
        t = jnp.dot(w_ref[k], xk, preferred_element_type=jnp.float32)
        y = t if y is None else y + t        # (C_OUT, B*L)

    # --- train-mode BatchNorm1d: biased batch stats over all B*L columns ----------
    # (bias-free y: conv bias cancels exactly in (y - mean); var unaffected)
    mean = jnp.mean(y, axis=1, keepdims=True)                  # (C_OUT, 1)
    var = jnp.mean((y - mean) ** 2, axis=1, keepdims=True)     # biased, like PyTorch
    scale = p_ref[0] * lax.rsqrt(var + BN_EPS)                 # gamma * rsqrt -> EUP
    shift_c = p_ref[1] - scale * mean                          # beta - scale*mean

    # --- FMA-shaped BN affine + ReLU ----------------------------------------------
    out = jnp.maximum(y * scale + shift_c, 0.0)

    # --- store directly in final (B, C_OUT, L) layout: aligned 128-lane stores ----
    for b in range(B):
        o_ref[b] = out[:, b * L:(b + 1) * L]


# ------------------------------- host wrapper ------------------------------------
def conv1d_block_forward(x, w, b, gamma, beta):
    """x: (B, C_IN, L) float32 -> (B, C_OUT, L) float32."""
    del b  # conv bias cancels exactly under train-mode BatchNorm (see kernel)
    # (C_OUT, C_IN, K) -> tap-major (K, C_OUT, C_IN): tiny, host-side, one-time.
    wk = jnp.transpose(w, (2, 0, 1)).astype(jnp.float32)
    # gamma/beta merged into one small param input.
    params = jnp.stack([gamma, beta]).reshape(2, C_OUT, 1).astype(jnp.float32)

    return pl.pallas_call(
        fused_conv_bn_relu_kernel,
        out_shape=jax.ShapeDtypeStruct((B, C_OUT, L), jnp.float32),
        in_specs=[
            pl.BlockSpec((B, C_IN, L), lambda: (0, 0, 0)),
            pl.BlockSpec((K, C_OUT, C_IN), lambda: (0, 0, 0)),
            pl.BlockSpec((2, C_OUT, 1), lambda: (0, 0, 0)),
        ],
        out_specs=pl.BlockSpec((B, C_OUT, L), lambda: (0, 0, 0)),
        scratch_shapes=[pltpu.VMEM((C_IN, BL), jnp.float32)],
    )(x.astype(jnp.float32), wk, params)


# ------------------------------- reference (plain JAX) ---------------------------
def conv1d_block_reference(x, w, b, gamma, beta):
    y = lax.conv_general_dilated(
        x, w, window_strides=(1,), padding=[(PAD, PAD)],
        dimension_numbers=("NCH", "OIH", "NCH"))
    y = y + b.reshape(1, C_OUT, 1)           # bias kept here: proves cancellation
    mean = jnp.mean(y, axis=(0, 2), keepdims=True)
    var = jnp.mean((y - mean) ** 2, axis=(0, 2), keepdims=True)
    xhat = (y - mean) * lax.rsqrt(var + BN_EPS)
    out = gamma.reshape(1, C_OUT, 1) * xhat + beta.reshape(1, C_OUT, 1)
    return jnp.maximum(out, 0.0)


if __name__ == "__main__":
    key = jax.random.PRNGKey(0)
    kx, kw, kb, kg, kbe = jax.random.split(key, 5)

    x = jax.random.normal(kx, (B, C_IN, L), dtype=jnp.float32)
    # Conv1d weight (C_OUT, C_IN, K), bias (C_OUT,)
    w = jax.random.normal(kw, (C_OUT, C_IN, K), dtype=jnp.float32) * 0.3
    b = jax.random.normal(kb, (C_OUT,), dtype=jnp.float32) * 0.1
    # BatchNorm affine params (perturbed so the affine path is exercised).
    gamma = 1.0 + 0.1 * jax.random.normal(kg, (C_OUT,), dtype=jnp.float32)
    beta = 0.1 * jax.random.normal(kbe, (C_OUT,), dtype=jnp.float32)

    out = conv1d_block_forward(x, w, b, gamma, beta)
    out = jax.block_until_ready(out)

    ref = conv1d_block_reference(x, w, b, gamma, beta)
    assert out.shape == (B, C_OUT, L)
    assert jnp.allclose(out, ref, atol=1e-4, rtol=1e-4), "mismatch vs JAX reference"

    print("KERNEL_OK")
</pallas_src>

<mosaic_0001>
module attributes {stable_mosaic.version = 11 : i64} {
  func.func @fused_conv_bn_relu_kernel(%arg0: memref<2x4x128xf32, #tpu.memory_space<vmem>>, %arg1: memref<3x8x4xf32, #tpu.memory_space<vmem>>, %arg2: memref<2x8x1xf32, #tpu.memory_space<vmem>>, %arg3: memref<2x8x128xf32, #tpu.memory_space<vmem>>, %arg4: memref<4x256xf32, #tpu.memory_space<vmem>>) attributes {dimension_semantics = [], scalar_prefetch = 0 : i64, scratch_operands = 1 : i64, tpu.core_type = #tpu.core_type<tc>} {
    %c0 = arith.constant 0 : index
    %c0_0 = arith.constant 0 : index
    %c0_1 = arith.constant 0 : index
    %0 = vector.load %arg0[%c0, %c0_0, %c0_1] : memref<2x4x128xf32, #tpu.memory_space<vmem>>, vector<1x4x128xf32>
    %1 = vector.shape_cast %0 : vector<1x4x128xf32> to vector<4x128xf32>
    %c0_2 = arith.constant 0 : index
    %c0_3 = arith.constant 0 : index
    %2 = vector.load %arg4[%c0_2, %c0_3] : memref<4x256xf32, #tpu.memory_space<vmem>>, vector<4x128xf32>
    tpu.vector_store %arg4[%c0_2, %c0_3], %1 {strides = array<i32>} : memref<4x256xf32, #tpu.memory_space<vmem>>, vector<4x128xf32>,
    %c1 = arith.constant 1 : index
    %c0_4 = arith.constant 0 : index
    %c0_5 = arith.constant 0 : index
    %3 = vector.load %arg0[%c1, %c0_4, %c0_5] : memref<2x4x128xf32, #tpu.memory_space<vmem>>, vector<1x4x128xf32>
    %4 = vector.shape_cast %3 : vector<1x4x128xf32> to vector<4x128xf32>
    %c0_6 = arith.constant 0 : index
    %c128 = arith.constant 128 : index
    %5 = vector.load %arg4[%c0_6, %c128] : memref<4x256xf32, #tpu.memory_space<vmem>>, vector<4x128xf32>
    tpu.vector_store %arg4[%c0_6, %c128], %4 {strides = array<i32>} : memref<4x256xf32, #tpu.memory_space<vmem>>, vector<4x128xf32>,
    %c0_7 = arith.constant 0 : index
    %c0_8 = arith.constant 0 : index
    %6 = vector.load %arg4[%c0_7, %c0_8] : memref<4x256xf32, #tpu.memory_space<vmem>>, vector<4x256xf32>
    %7 = tpu.iota {dimensions = array<i32: 1>} : vector<4x256xi32>
    %c128_i32 = arith.constant 128 : i32
    %c0_i32 = arith.constant 0 : i32
    %8 = arith.cmpi eq, %c128_i32, %c0_i32 : i32
    %c1_i32 = arith.constant 1 : i32
    %9 = arith.select %8, %c1_i32, %c128_i32 : i32
    %10 = vector.broadcast %9 : i32 to vector<4x256xi32>
    %11 = arith.remsi %7, %10 : vector<4x256xi32>
    %c0_i32_9 = arith.constant 0 : i32
    %12 = vector.broadcast %c0_i32_9 : i32 to vector<4x256xi32>
    %13 = arith.cmpi ne, %11, %12 : vector<4x256xi32>
    %c0_i32_10 = arith.constant 0 : i32
    %14 = vector.broadcast %c0_i32_10 : i32 to vector<4x256xi32>
    %15 = arith.cmpi slt, %11, %14 : vector<4x256xi32>
    %c0_i32_11 = arith.constant 0 : i32
    %16 = arith.cmpi slt, %9, %c0_i32_11 : i32
    %17 = vector.broadcast %16 : i1 to vector<4x256xi1>
    %18 = vector.broadcast %17 : vector<4x256xi1> to vector<4x256xi1>
    %19 = arith.xori %15, %18 : vector<4x256xi1>
    %20 = arith.andi %19, %13 : vector<4x256xi1>
    %21 = vector.broadcast %9 : i32 to vector<4x256xi32>
    %22 = arith.addi %11, %21 : vector<4x256xi32>
    %23 = arith.select %20, %22, %11 : vector<4x256xi1>, vector<4x256xi32>
    %c1_i32_12 = arith.constant 1 : i32
    %24 = tpu.dynamic_rotate %6 by %c1_i32_12 dim 1 : vector<4x256xf32>, i32 -> vector<4x256xf32>
    %c1_i32_13 = arith.constant 1 : i32
    %25 = vector.broadcast %c1_i32_13 : i32 to vector<4x256xi32>
    %26 = arith.cmpi sge, %23, %25 : vector<4x256xi32>
    %c129_i32 = arith.constant 129 : i32
    %27 = vector.broadcast %c129_i32 : i32 to vector<4x256xi32>
    %28 = arith.cmpi slt, %23, %27 : vector<4x256xi32>
    %29 = arith.andi %26, %28 : vector<4x256xi1>
    %cst = arith.constant 0.000000e+00 : f32
    %30 = vector.broadcast %cst : f32 to vector<4x256xf32>
    %31 = arith.select %29, %24, %30 : vector<4x256xi1>, vector<4x256xf32>
    %c0_14 = arith.constant 0 : index
    %c0_15 = arith.constant 0 : index
    %c0_16 = arith.constant 0 : index
    %32 = vector.load %arg1[%c0_14, %c0_15, %c0_16] : memref<3x8x4xf32, #tpu.memory_space<vmem>>, vector<1x8x4xf32>
    %33 = vector.shape_cast %32 : vector<1x8x4xf32> to vector<8x4xf32>
    %cst_17 = arith.constant dense<0.000000e+00> : vector<8x256xf32>
    %34 = tpu.matmul %33, %31, %cst_17 {dimension_numbers = #tpu.dot_dimension_numbers<[1], [0], [0], [1], [0, 0, 1, 1], [], []>} : vector<8x4xf32>, vector<4x256xf32>, vector<8x256xf32> -> vector<8x256xf32>
    %c1_18 = arith.constant 1 : index
    %c0_19 = arith.constant 0 : index
    %c0_20 = arith.constant 0 : index
    %35 = vector.load %arg1[%c1_18, %c0_19, %c0_20] : memref<3x8x4xf32, #tpu.memory_space<vmem>>, vector<1x8x4xf32>
    %36 = vector.shape_cast %35 : vector<1x8x4xf32> to vector<8x4xf32>
    %cst_21 = arith.constant dense<0.000000e+00> : vector<8x256xf32>
    %37 = tpu.matmul %36, %6, %cst_21 {dimension_numbers = #tpu.dot_dimension_numbers<[1], [0], [0], [1], [0, 0, 1, 1], [], []>} : vector<8x4xf32>, vector<4x256xf32>, vector<8x256xf32> -> vector<8x256xf32>
    %38 = arith.addf %34, %37 : vector<8x256xf32>
    %c255_i32 = arith.constant 255 : i32
    %39 = tpu.dynamic_rotate %6 by %c255_i32 dim 1 : vector<4x256xf32>, i32 -> vector<4x256xf32>
    %c-1_i32 = arith.constant -1 : i32
    %40 = vector.broadcast %c-1_i32 : i32 to vector<4x256xi32>
    %41 = arith.cmpi sge, %23, %40 : vector<4x256xi32>
    %c127_i32 = arith.constant 127 : i32
    %42 = vector.broadcast %c127_i32 : i32 to vector<4x256xi32>
    %43 = arith.cmpi slt, %23, %42 : vector<4x256xi32>
    %44 = arith.andi %41, %43 : vector<4x256xi1>
    %cst_22 = arith.constant 0.000000e+00 : f32
    %45 = vector.broadcast %cst_22 : f32 to vector<4x256xf32>
    %46 = arith.select %44, %39, %45 : vector<4x256xi1>, vector<4x256xf32>
    %c2 = arith.constant 2 : index
    %c0_23 = arith.constant 0 : index
    %c0_24 = arith.constant 0 : index
    %47 = vector.load %arg1[%c2, %c0_23, %c0_24] : memref<3x8x4xf32, #tpu.memory_space<vmem>>, vector<1x8x4xf32>
    %48 = vector.shape_cast %47 : vector<1x8x4xf32> to vector<8x4xf32>
    %cst_25 = arith.constant dense<0.000000e+00> : vector<8x256xf32>
    %49 = tpu.matmul %48, %46, %cst_25 {dimension_numbers = #tpu.dot_dimension_numbers<[1], [0], [0], [1], [0, 0, 1, 1], [], []>} : vector<8x4xf32>, vector<4x256xf32>, vector<8x256xf32> -> vector<8x256xf32>
    %50 = arith.addf %38, %49 : vector<8x256xf32>
    %cst_26 = arith.constant dense<0.000000e+00> : vector<8xf32>
    %51 = vector.multi_reduction <add>, %50, %cst_26 [1] : vector<8x256xf32> to vector<8xf32>
    %52 = vector.shape_cast %51 : vector<8xf32> to vector<8x1xf32>
    %cst_27 = arith.constant 2.560000e+02 : f32
    %53 = vector.broadcast %cst_27 : f32 to vector<8x1xf32>
    %54 = arith.divf %52, %53 : vector<8x1xf32>
    %55 = vector.broadcast %54 : vector<8x1xf32> to vector<8x256xf32>
    %56 = arith.subf %50, %55 : vector<8x256xf32>
    %57 = arith.mulf %56, %56 : vector<8x256xf32>
    %cst_28 = arith.constant dense<0.000000e+00> : vector<8xf32>
    %58 = vector.multi_reduction <add>, %57, %cst_28 [1] : vector<8x256xf32> to vector<8xf32>
    %59 = vector.shape_cast %58 : vector<8xf32> to vector<8x1xf32>
    %cst_29 = arith.constant 2.560000e+02 : f32
    %60 = vector.broadcast %cst_29 : f32 to vector<8x1xf32>
    %61 = arith.divf %59, %60 : vector<8x1xf32>
    %c0_30 = arith.constant 0 : index
    %c0_31 = arith.constant 0 : index
    %c0_32 = arith.constant 0 : index
    %62 = vector.load %arg2[%c0_30, %c0_31, %c0_32] : memref<2x8x1xf32, #tpu.memory_space<vmem>>, vector<1x8x1xf32>
    %63 = vector.shape_cast %62 : vector<1x8x1xf32> to vector<8x1xf32>
    %cst_33 = arith.constant 9.99999974E-6 : f32
    %64 = vector.broadcast %cst_33 : f32 to vector<8x1xf32>
    %65 = arith.addf %61, %64 : vector<8x1xf32>
    %66 = math.rsqrt %65 : vector<8x1xf32>
    %67 = arith.mulf %63, %66 : vector<8x1xf32>
    %c1_34 = arith.constant 1 : index
    %c0_35 = arith.constant 0 : index
    %c0_36 = arith.constant 0 : index
    %68 = vector.load %arg2[%c1_34, %c0_35, %c0_36] : memref<2x8x1xf32, #tpu.memory_space<vmem>>, vector<1x8x1xf32>
    %69 = vector.shape_cast %68 : vector<1x8x1xf32> to vector<8x1xf32>
    %70 = arith.mulf %67, %54 : vector<8x1xf32>
    %71 = arith.subf %69, %70 : vector<8x1xf32>
    %72 = vector.broadcast %67 : vector<8x1xf32> to vector<8x256xf32>
    %73 = arith.mulf %50, %72 : vector<8x256xf32>
    %74 = vector.broadcast %71 : vector<8x1xf32> to vector<8x256xf32>
    %75 = arith.addf %73, %74 : vector<8x256xf32>
    %cst_37 = arith.constant 0.000000e+00 : f32
    %76 = vector.broadcast %cst_37 : f32 to vector<8x256xf32>
    %77 = arith.maximumf %75, %76 : vector<8x256xf32>
    %78 = vector.extract_strided_slice %77 {offsets = [0, 0], sizes = [8, 128], strides = [1, 1]} : vector<8x256xf32> to vector<8x128xf32>
    %c0_38 = arith.constant 0 : index
    %c0_39 = arith.constant 0 : index
    %c0_40 = arith.constant 0 : index
    %79 = vector.load %arg3[%c0_38, %c0_39, %c0_40] : memref<2x8x128xf32, #tpu.memory_space<vmem>>, vector<1x8x128xf32>
    %80 = vector.shape_cast %79 : vector<1x8x128xf32> to vector<8x128xf32>
    %81 = vector.shape_cast %78 : vector<8x128xf32> to vector<1x8x128xf32>
    tpu.vector_store %arg3[%c0_38, %c0_39, %c0_40], %81 {strides = array<i32>} : memref<2x8x128xf32, #tpu.memory_space<vmem>>, vector<1x8x128xf32>,
    %82 = vector.extract_strided_slice %77 {offsets = [0, 128], sizes = [8, 128], strides = [1, 1]} : vector<8x256xf32> to vector<8x128xf32>
    %c1_41 = arith.constant 1 : index
    %c0_42 = arith.constant 0 : index
    %c0_43 = arith.constant 0 : index
    %83 = vector.load %arg3[%c1_41, %c0_42, %c0_43] : memref<2x8x128xf32, #tpu.memory_space<vmem>>, vector<1x8x128xf32>
    %84 = vector.shape_cast %83 : vector<1x8x128xf32> to vector<8x128xf32>
    %85 = vector.shape_cast %82 : vector<8x128xf32> to vector<1x8x128xf32>
    tpu.vector_store %arg3[%c1_41, %c0_42, %c0_43], %85 {strides = array<i32>} : memref<2x8x128xf32, #tpu.memory_space<vmem>>, vector<1x8x128xf32>,
    return
  }
}

</mosaic_0001>

<llo_original>
// kernel: tpu_custom_call.1
$region0: #{tpu_custom_call.1}
  #allocation0 [shape = 'u32[]', space=smem, size = 0x4, offset = 0x4, fixed_abs, tag = 'smem constant byte address 0x4 - core index']
  #allocation1 [shape = 'u32[144,128]{1,0:T(1,128)}', space=vmem, size = 0x12000, scoped, tag = 'internal scratch']
  #allocation2 [shape = 'f32[4,256]{1,0:T(4,128)}', space=vmem, size = 0x1000, scoped, tag = 'scratch operand']
  %s0 = inlined_call_operand.vmem [shape: f32[2,4,128], index: 0, kind: input, shape index: {}]
  %s1 = inlined_call_operand.vmem [shape: f32[3,8,4], index: 1, kind: input, shape index: {}]
  %s2 = inlined_call_operand.vmem [shape: f32[2,8,1], index: 2, kind: input, shape index: {}]
  %s3 = inlined_call_operand.hbm [shape: f32[2,8,128], index: 3, kind: output, shape index: {}]
  %s4 = sld [smem:[#allocation0]]
  $region22: #{tpu_custom_call.1} parent=0
    _
  %s6 = ssub.s32 1, %s4
  %s7 = scalar_select 0, %s6, %s4
  $region1: #{tpu_custom_call.1} parent=0
    #allocation3 [shape = 'u8[8192]{0}', space=vmem, size = 0x2000, scoped, tag = 'output window, operand 0, single buffered']
    #allocation4 [shape = 's32[1]{0}', space=sflag, size = 0x4, scoped, tag = 'scoped memory for tpu_custom_call.1']
    %8 = vsyncpa [#allocation4], 0
    // Predicated region
    $region2: #{tpu_custom_call.1} parent=1 // pred_check
      _
    $region3: #{tpu_custom_call.1} parent=1 // pred_check_branch
      %10 = sbr.rel (0) target = $region5
    $region4: #{tpu_custom_call.1} parent=1 // pred_region
      _
    $region5: #{tpu_custom_call.1} parent=1 // pred_fallthru
      _
    // Predicated region
    $region6: #{tpu_custom_call.1} parent=1 // pred_check
      _
    $region7: #{tpu_custom_call.1} parent=1 // pred_check_branch
      %12 = sbr.rel (0) target = $region9
    $region8: #{tpu_custom_call.1} parent=1 // pred_region
      _
    $region9: #{tpu_custom_call.1} parent=1 // pred_fallthru
      _
    // Predicated region
    $region10: #{tpu_custom_call.1} parent=1 // pred_check
      _
    $region11: #{tpu_custom_call.1} parent=1 // pred_check_branch
      %14 = sbr.rel (0) target = $region13
    $region12: #{tpu_custom_call.1} parent=1 // pred_region
      _
    $region13: #{tpu_custom_call.1} parent=1 // pred_fallthru
      _
    %v15 = vld [vmem:[%s0] sm:$0xf]
    %16 = vst [vmem:[#allocation2] sm:$0xf] %v15
    %s17 = scalar_lea.vmem %s0, 4
    %v18 = vld [vmem:[%s17] sm:$0xf]
    %19 = vst [vmem:[#allocation2 + $0x4] sm:$0xf] %v18
    %v20 = vld [vmem:[#allocation2] sm:$0xff]
    %v21 = vlaneseq
    %v22 = vand.u32 %v21, 127
    %v23 = vadd.s32 %v22, 128
    %vm24 = vcmp.lt.s32.totalorder %v22, 0
    %v25 = vsub.s32 0, %v22
    %v26 = vsel %vm24, %v25, %v22
    %v27 = vshrl.u32 %v26, 7
    %v28 = vand.u32 %v26, 127
    %v29 = vsub.s32 0, %v28
    %v30 = vsel %vm24, %v29, %v28
    %vm31 = vcmp.lt.s32.totalorder %v23, 0
    %v32 = vsub.s32 0, %v23
    %v33 = vsel %vm31, %v32, %v23
    %v34 = vshrl.u32 %v33, 7
    %v35 = vand.u32 %v33, 127
    %v36 = vsub.s32 0, %v35
    %v37 = vsel %vm31, %v36, %v35
    %vm38 = vcmp.ne.s32.totalorder %v30, 0
    %vm39 = vcmp.ne.s32.totalorder %v37, 0
    %vm40 = vcmp.lt.s32.totalorder %v30, 0
    %vm41 = vcmp.lt.s32.totalorder %v37, 0
    %vm42 = vmand %vm40, %vm38
    %vm43 = vmand %vm41, %vm39
    %v44 = vadd.s32 %v30, 128
    %v45 = vadd.s32 %v37, 128
    %v46 = vsel %vm42, %v44, %v30
    %v47 = vsel %vm43, %v45, %v37
    %v49 = vcombine.high %v20, %v20
    %51 = vrot.lane.b32.xlu0 %v20, 1
    %v52 = vpop.permute.xlu0 %51
    %53 = vrot.lane.b32.xlu0 %v49, 1
    %v54 = vpop.permute.xlu0 %53
    %vm55 = vcmp.lt.s32.totalorder %v22, 1
    %v56 = vsel %vm55, %v52, %v54
    %v57 = vsel %vm55, %v54, %v52
    %vm58 = vcmp.ge.s32.totalorder %v46, 1
    %vm59 = vcmp.ge.s32.totalorder %v47, 1
    %vm60 = vcmp.lt.s32.totalorder %v46, 129
    %vm61 = vcmp.lt.s32.totalorder %v47, 129
    %vm62 = vmand %vm58, %vm60
    %vm63 = vmand %vm59, %vm61
    %v64 = vsel %vm62, %v57, 0.0
    %v65 = vsel %vm63, %v56, 0.0
    %v66 = vld [vmem:[%s1] sm:$0xff]
    %s67 = scalar_lea.vmem %s1, 8
    %v68 = vld [vmem:[%s67] sm:$0xff]
    %vm69 = vcmask 31744
    %v71 = vsel %vm69, %v68, 0
    %vm73 = vcmask 1043456
    %v74 = vsel %vm73, %v20, 0
    %v76 = vsel %vm73, %v49, 0
    %78 = vmatprep.subr.mxu0 0.0
    %79 = vmatpush1.msra.mxu0 0.0
    %80 = vmatprep.subr.mxu0 0.0
    %81 = vmatpush1.msra.mxu0 0.0
    %82 = vmatprep.subr.mxu0 0.0
    %83 = vmatpush1.msra.mxu0 0.0
    %84 = vmatprep.subr.mxu0 0.0
    %85 = vmatpush1.msra.mxu0 0.0
    %86 = vmatprep.subr.mxu0 0.0
    %87 = vmatpush1.msra.mxu0 0.0
    %88 = vmatprep.subr.mxu0 0.0
    %89 = vmatpush1.msra.mxu0 0.0
    %90 = vmatprep.subr.mxu0 0.0
    %91 = vmatpush1.msra.mxu0 0.0
    %92 = vmatprep.subr.mxu0 0.0
    %93 = vmatpush1.msra.mxu0 0.0
    %94 = vmatprep.subr.mxu0 0.0
    %95 = vmatpush1.msra.mxu0 0.0
    %96 = vmatprep.subr.mxu0 0.0
    %97 = vmatpush1.msra.mxu0 0.0
    %98 = vmatprep.subr.mxu0 0.0
    %99 = vmatpush1.msra.mxu0 0.0
    %100 = vmatprep.subr.mxu0 0.0
    %101 = vmatpush1.msra.mxu0 0.0
    %102 = vmatprep.subr.mxu0 0.0
    %103 = vmatpush1.msra.mxu0 0.0
    %104 = vmatprep.subr.mxu0 0.0
    %105 = vmatpush1.msra.mxu0 0.0
    %106 = vmatprep.subr.mxu0 0.0
    %107 = vmatpush1.msra.mxu0 0.0
    %108 = vmatprep.subr.mxu0 %v76
    %109 = vmatpush1.msra.mxu0 %v74
    %110 = vmatprep.subr.mxu0 0.0
    %111 = vmatpush2.msra.mxu0 0.0
    %112 = vmatprep.subr.mxu0 0.0
    %113 = vmatpush2.msra.mxu0 0.0
    %114 = vmatprep.subr.mxu0 0.0
    %115 = vmatpush2.msra.mxu0 0.0
    %116 = vmatprep.subr.mxu0 0.0
    %117 = vmatpush2.msra.mxu0 0.0
    %118 = vmatprep.subr.mxu0 0.0
    %119 = vmatpush2.msra.mxu0 0.0
    %120 = vmatprep.subr.mxu0 0.0
    %121 = vmatpush2.msra.mxu0 0.0
    %122 = vmatprep.subr.mxu0 0.0
    %123 = vmatpush2.msra.mxu0 0.0
    %124 = vmatprep.subr.mxu0 0.0
    %125 = vmatpush2.msra.mxu0 0.0
    %126 = vmatprep.subr.mxu0 0.0
    %127 = vmatpush2.msra.mxu0 0.0
    %128 = vmatprep.subr.mxu0 0.0
    %129 = vmatpush2.msra.mxu0 0.0
    %130 = vmatprep.subr.mxu0 0.0
    %131 = vmatpush2.msra.mxu0 0.0
    %132 = vmatprep.subr.mxu0 0.0
    %133 = vmatpush2.msra.mxu0 0.0
    %134 = vmatprep.subr.mxu0 0.0
    %135 = vmatpush2.msra.mxu0 0.0
    %136 = vmatprep.subr.mxu0 0.0
    %137 = vmatpush2.msra.mxu0 0.0
    %138 = vmatprep.subr.mxu0 0.0
    %139 = vmatpush2.msra.mxu0 0.0
    %140 = vmatprep.subr.mxu0 0.0
    %141 = vmatpush2.msra.mxu0 0.0
    %142 = vmatprep.mubr.f32.mxu0 0.0
    %143 = vmatmul.mubr.f32.gmra.mxu0 %v71
    %v144 = vpop.f32.mrf.mxu0
    %v145 = vadd.f32 0.0, %v144
    %v146 = vpop.f32.mrf.mxu0
    %v147 = vadd.f32 0.0, %v146
    %148 = vdwg.mxu0
    %v150 = vsel %vm69, %v66, 0
    %v153 = vsel %vm73, %v64, 0
    %v156 = vsel %vm73, %v65, 0
    %158 = vmatprep.subr.mxu0 0.0
    %159 = vmatpush1.msra.mxu0 0.0
    %160 = vmatprep.subr.mxu0 0.0
    %161 = vmatpush1.msra.mxu0 0.0
    %162 = vmatprep.subr.mxu0 0.0
    %163 = vmatpush1.msra.mxu0 0.0
    %164 = vmatprep.subr.mxu0 0.0
    %165 = vmatpush1.msra.mxu0 0.0
    %166 = vmatprep.subr.mxu0 0.0
    %167 = vmatpush1.msra.mxu0 0.0
    %168 = vmatprep.subr.mxu0 0.0
    %169 = vmatpush1.msra.mxu0 0.0
    %170 = vmatprep.subr.mxu0 0.0
    %171 = vmatpush1.msra.mxu0 0.0
    %172 = vmatprep.subr.mxu0 0.0
    %173 = vmatpush1.msra.mxu0 0.0
    %174 = vmatprep.subr.mxu0 0.0
    %175 = vmatpush1.msra.mxu0 0.0
    %176 = vmatprep.subr.mxu0 0.0
    %177 = vmatpush1.msra.mxu0 0.0
    %178 = vmatprep.subr.mxu0 0.0
    %179 = vmatpush1.msra.mxu0 0.0
    %180 = vmatprep.subr.mxu0 0.0
    %181 = vmatpush1.msra.mxu0 0.0
    %182 = vmatprep.subr.mxu0 0.0
    %183 = vmatpush1.msra.mxu0 0.0
    %184 = vmatprep.subr.mxu0 0.0
    %185 = vmatpush1.msra.mxu0 0.0
    %186 = vmatprep.subr.mxu0 0.0
    %187 = vmatpush1.msra.mxu0 0.0
    %188 = vmatprep.subr.mxu0 %v156
    %189 = vmatpush1.msra.mxu0 %v153
    %190 = vmatprep.subr.mxu0 0.0
    %191 = vmatpush2.msra.mxu0 0.0
    %192 = vmatprep.subr.mxu0 0.0
    %193 = vmatpush2.msra.mxu0 0.0
    %194 = vmatprep.subr.mxu0 0.0
    %195 = vmatpush2.msra.mxu0 0.0
    %196 = vmatprep.subr.mxu0 0.0
    %197 = vmatpush2.msra.mxu0 0.0
    %198 = vmatprep.subr.mxu0 0.0
    %199 = vmatpush2.msra.mxu0 0.0
    %200 = vmatprep.subr.mxu0 0.0
    %201 = vmatpush2.msra.mxu0 0.0
    %202 = vmatprep.subr.mxu0 0.0
    %203 = vmatpush2.msra.mxu0 0.0
    %204 = vmatprep.subr.mxu0 0.0
    %205 = vmatpush2.msra.mxu0 0.0
    %206 = vmatprep.subr.mxu0 0.0
    %207 = vmatpush2.msra.mxu0 0.0
    %208 = vmatprep.subr.mxu0 0.0
    %209 = vmatpush2.msra.mxu0 0.0
    %210 = vmatprep.subr.mxu0 0.0
    %211 = vmatpush2.msra.mxu0 0.0
    %212 = vmatprep.subr.mxu0 0.0
    %213 = vmatpush2.msra.mxu0 0.0
    %214 = vmatprep.subr.mxu0 0.0
    %215 = vmatpush2.msra.mxu0 0.0
    %216 = vmatprep.subr.mxu0 0.0
    %217 = vmatpush2.msra.mxu0 0.0
    %218 = vmatprep.subr.mxu0 0.0
    %219 = vmatpush2.msra.mxu0 0.0
    %220 = vmatprep.subr.mxu0 0.0
    %221 = vmatpush2.msra.mxu0 0.0
    %222 = vmatprep.mubr.f32.mxu0 0.0
    %223 = vmatmul.mubr.f32.gmra.mxu0 %v150
    %v224 = vpop.f32.mrf.mxu0
    %v225 = vadd.f32 %v145, %v224
    %v226 = vpop.f32.mrf.mxu0
    %v227 = vadd.f32 %v147, %v226
    %228 = vdwg.mxu0
    %229 = vrot.lane.b32.xlu0 %v20, 127
    %v230 = vpop.permute.xlu0 %229
    %231 = vrot.lane.b32.xlu0 %v49, 127
    %v232 = vpop.permute.xlu0 %231
    %vm233 = vcmp.lt.s32.totalorder %v22, 127
    %v234 = vsel %vm233, %v230, %v232
    %v235 = vsel %vm233, %v232, %v230
    %vm236 = vcmp.ge.s32.totalorder %v46, 4294967295
    %vm237 = vcmp.ge.s32.totalorder %v47, 4294967295
    %vm238 = vcmp.lt.s32.totalorder %v46, 127
    %vm239 = vcmp.lt.s32.totalorder %v47, 127
    %vm240 = vmand %vm236, %vm238
    %vm241 = vmand %vm237, %vm239
    %v242 = vsel %vm240, %v234, 0.0
    %v243 = vsel %vm241, %v235, 0.0
    %s244 = scalar_lea.vmem %s1, 16
    %v245 = vld [vmem:[%s244] sm:$0xff]
    %v247 = vsel %vm69, %v245, 0
    %v250 = vsel %vm73, %v242, 0
    %v253 = vsel %vm73, %v243, 0
    %255 = vmatprep.subr.mxu0 0.0
    %256 = vmatpush1.msra.mxu0 0.0
    %257 = vmatprep.subr.mxu0 0.0
    %258 = vmatpush1.msra.mxu0 0.0
    %259 = vmatprep.subr.mxu0 0.0
    %260 = vmatpush1.msra.mxu0 0.0
    %261 = vmatprep.subr.mxu0 0.0
    %262 = vmatpush1.msra.mxu0 0.0
    %263 = vmatprep.subr.mxu0 0.0
    %264 = vmatpush1.msra.mxu0 0.0
    %265 = vmatprep.subr.mxu0 0.0
    %266 = vmatpush1.msra.mxu0 0.0
    %267 = vmatprep.subr.mxu0 0.0
    %268 = vmatpush1.msra.mxu0 0.0
    %269 = vmatprep.subr.mxu0 0.0
    %270 = vmatpush1.msra.mxu0 0.0
    %271 = vmatprep.subr.mxu0 0.0
    %272 = vmatpush1.msra.mxu0 0.0
    %273 = vmatprep.subr.mxu0 0.0
    %274 = vmatpush1.msra.mxu0 0.0
    %275 = vmatprep.subr.mxu0 0.0
    %276 = vmatpush1.msra.mxu0 0.0
    %277 = vmatprep.subr.mxu0 0.0
    %278 = vmatpush1.msra.mxu0 0.0
    %279 = vmatprep.subr.mxu0 0.0
    %280 = vmatpush1.msra.mxu0 0.0
    %281 = vmatprep.subr.mxu0 0.0
    %282 = vmatpush1.msra.mxu0 0.0
    %283 = vmatprep.subr.mxu0 0.0
    %284 = vmatpush1.msra.mxu0 0.0
    %285 = vmatprep.subr.mxu0 %v253
    %286 = vmatpush1.msra.mxu0 %v250
    %287 = vmatprep.subr.mxu0 0.0
    %288 = vmatpush2.msra.mxu0 0.0
    %289 = vmatprep.subr.mxu0 0.0
    %290 = vmatpush2.msra.mxu0 0.0
    %291 = vmatprep.subr.mxu0 0.0
    %292 = vmatpush2.msra.mxu0 0.0
    %293 = vmatprep.subr.mxu0 0.0
    %294 = vmatpush2.msra.mxu0 0.0
    %295 = vmatprep.subr.mxu0 0.0
    %296 = vmatpush2.msra.mxu0 0.0
    %297 = vmatprep.subr.mxu0 0.0
    %298 = vmatpush2.msra.mxu0 0.0
    %299 = vmatprep.subr.mxu0 0.0
    %300 = vmatpush2.msra.mxu0 0.0
    %301 = vmatprep.subr.mxu0 0.0
    %302 = vmatpush2.msra.mxu0 0.0
    %303 = vmatprep.subr.mxu0 0.0
    %304 = vmatpush2.msra.mxu0 0.0
    %305 = vmatprep.subr.mxu0 0.0
    %306 = vmatpush2.msra.mxu0 0.0
    %307 = vmatprep.subr.mxu0 0.0
    %308 = vmatpush2.msra.mxu0 0.0
    %309 = vmatprep.subr.mxu0 0.0
    %310 = vmatpush2.msra.mxu0 0.0
    %311 = vmatprep.subr.mxu0 0.0
    %312 = vmatpush2.msra.mxu0 0.0
    %313 = vmatprep.subr.mxu0 0.0
    %314 = vmatpush2.msra.mxu0 0.0
    %315 = vmatprep.subr.mxu0 0.0
    %316 = vmatpush2.msra.mxu0 0.0
    %317 = vmatprep.subr.mxu0 0.0
    %318 = vmatpush2.msra.mxu0 0.0
    %319 = vmatprep.mubr.f32.mxu0 0.0
    %320 = vmatmul.mubr.f32.gmra.mxu0 %v247
    %v321 = vpop.f32.mrf.mxu0
    %v322 = vadd.f32 0.0, %v321
    %v323 = vpop.f32.mrf.mxu0
    %v324 = vadd.f32 0.0, %v323
    %325 = vdwg.mxu0
    %v326 = vadd.f32 %v225, %v322
    %v327 = vadd.f32 %v227, %v324
    %v328 = vadd.f32 %v326, %v327
    %329 = vadd.xlane.f32.xlu0 %v328
    %v330 = vpop.xlane.xlu0 %329
    %v331 = vrcp.pop 256.0
    %v332 = vmul.f32 %v330, %v331
    %v333 = vsub.f32 %v326, %v332
    %v334 = vsub.f32 %v327, %v332
    %v335 = vmul.f32 %v333, %v333
    %v336 = vmul.f32 %v334, %v334
    %v337 = vadd.f32 %v335, %v336
    %338 = vadd.xlane.f32.xlu0 %v337
    %v339 = vpop.xlane.xlu0 %338
    %v340 = vmul.f32 %v339, %v331
    %v341 = vld [vmem:[%s2] sm:$0xff]
    %v342 = vadd.f32 %v340, 1e-05
    %v343 = vrsqrt.pop %v342
    %v344 = vmul.f32 %v341, %v343
    %s345 = scalar_lea.vmem %s2, 8
    %v346 = vld [vmem:[%s345] sm:$0xff]
    %v347 = vmul.f32 %v344, %v332
    %v348 = vsub.f32 %v346, %v347
    %350 = vset.pattern.permute.xlu0 0
    %351 = vperm.xlu0 %350, %v344
    %v352 = vpop.permute.xlu0 %351
    %v354 = vmul.f32 %v326, %v352
    %v355 = vmul.f32 %v327, %v352
    %357 = vset.pattern.permute.xlu0 0
    %358 = vperm.xlu0 %357, %v348
    %v359 = vpop.permute.xlu0 %358
    %v361 = vadd.f32 %v354, %v359
    %v362 = vadd.f32 %v355, %v359
    %v363 = vmax.f32 %v361, 0.0
    %v364 = vmax.f32 %v362, 0.0
    %365 = vst [vmem:[#allocation3] sm:$0xff] %v363
    %s366 = scalar_lea.vmem [#allocation3], 8
    %367 = vst [vmem:[%s366] sm:$0xff] %v364
    // Predicated region
    $region14: #{tpu_custom_call.1} parent=1 // pred_check
      _
    $region15: #{tpu_custom_call.1} parent=1 // pred_check_branch
      %369 = sbr.rel (0) target = $region17
    $region16: #{tpu_custom_call.1} parent=1 // pred_region
      %s371 = ssub.s32 256, 256
      %372 = vsyncadd [#allocation4], %s371
      %s373 = sshll.u32 [#allocation3], 4
      %s374 = int_to_ptr.vmem [resolvable:$true] %s373
      %379 = dma.vmem_to_hbm [thread:$0]  %s374, 256, %s3, [#allocation4], 128, 128, 8
    $region17: #{tpu_custom_call.1} parent=1 // pred_fallthru
      _
    // Predicated region
    $region18: #{tpu_custom_call.1} parent=1 // pred_check
      _
    $region19: #{tpu_custom_call.1} parent=1 // pred_check_branch
      %381 = sbr.rel (0) target = $region21
    $region20: #{tpu_custom_call.1} parent=1 // pred_region
      %382 = dma.done [#allocation4], 256
    $region21: #{tpu_custom_call.1} parent=1 // pred_fallthru
      _
    %383 = vsyncpa [#allocation4], 1

</llo_original>
